<compile_context>
chip_gen: v7x
topology: tpu7x:2x2x1
jax: 0.10.0
libtpu: 0.0.40
codegen_flags: <defaults>
</compile_context>

<pallas_src>
import math

import jax
import jax.numpy as jnp
from jax.experimental import pallas as pl
from jax.experimental.pallas import tpu as pltpu


def _glu_kernel(x_ref, w12_ref, b12_ref, w3_ref, b3_ref, o_ref):
    # x_ref  : (1, C, TS) VMEM  — one spatial tile of one batch element
    # w12_ref: (2C, C)    VMEM  — stacked conv1/conv2 weights (resident)
    # b12_ref: (2C, 1)    VMEM f32
    # w3_ref : (C, C)     VMEM
    # b3_ref : (C, 1)     VMEM f32
    # o_ref  : (1, C, TS) VMEM
    C = w3_ref.shape[0]
    x = x_ref[0]                                                   # (C, TS)

    # conv1 + conv2 fused into a single MXU matmul with f32 accumulation.
    y = jnp.dot(w12_ref[...], x, preferred_element_type=jnp.float32) + b12_ref[...]
    x1 = y[:C]                                                     # (C, TS) f32
    x2 = y[C:]                                                     # (C, TS) f32

    # GLU gate: sigmoid(x2) = 0.5 * (tanh(0.5 * x2) + 1)  (EUP-friendly form).
    gate = 0.5 * (jnp.tanh(0.5 * x2) + 1.0)
    h = x1 * gate
    # TODO(synk): nn.Dropout omitted — identity at inference; training-mode
    # dropout would need pltpu.prng_seed / pltpu.prng_random_bits.

    out = jnp.dot(w3_ref[...], h.astype(w3_ref.dtype),
                  preferred_element_type=jnp.float32) + b3_ref[...]
    o_ref[0] = out.astype(o_ref.dtype)


def glu_forward(x, w1, b1, w2, b2, w3, b3, *, ts=2048):
    """x: (B, C, H, W); wN: (C, C, 1, 1); bN: (C,) -> (B, C, H, W)."""
    B, C, H, W = x.shape
    HW = H * W

    # Lane-dense spatial tile: multiple of 128, as big as useful but no
    # bigger than the (rounded-up) spatial extent.
    ts = min(ts, ((HW + 127) // 128) * 128)
    ts = max(128, (ts // 128) * 128)
    # Keep >= 2 grid steps where possible so v7x megacore can split the work.
    while B * pl.cdiv(HW, ts) < 2 and ts > 128:
        ts = max(128, ((ts // 2) // 128) * 128)
    n_s = pl.cdiv(HW, ts)

    # No jnp.pad / trailing slice: ragged-tail lanes never leak into valid
    # lanes (contraction is over C only) and OOB output lanes are dropped.
    xf = x.reshape(B, C, HW)

    # 1x1 Conv2d weight (Co, Ci, 1, 1) -> (Co, Ci); stack conv1/conv2.
    w12 = jnp.concatenate([w1.reshape(C, C), w2.reshape(C, C)], axis=0)  # (2C, C)
    b12 = jnp.concatenate([b1, b2], axis=0).reshape(2 * C, 1).astype(jnp.float32)
    w3m = w3.reshape(C, C)
    b3c = b3.reshape(C, 1).astype(jnp.float32)

    const = lambda b, s: (0, 0)  # weights/biases stay VMEM-resident

    out = pl.pallas_call(
        _glu_kernel,
        out_shape=jax.ShapeDtypeStruct((B, C, HW), x.dtype),
        grid=(B, n_s),
        in_specs=[
            pl.BlockSpec((1, C, ts), lambda b, s: (b, 0, s)),   # x tile
            pl.BlockSpec((2 * C, C), const),                    # w12 (stacked)
            pl.BlockSpec((2 * C, 1), const),                    # b12
            pl.BlockSpec((C, C), const),                        # w3
            pl.BlockSpec((C, 1), const),                        # b3
        ],
        out_specs=pl.BlockSpec((1, C, ts), lambda b, s: (b, 0, s)),
        compiler_params=pltpu.CompilerParams(
            dimension_semantics=("parallel", "parallel"),
            vmem_limit_bytes=32 * 1024 * 1024,  # explicit: v5e scoped default is 16 MiB
        ),
    )(xf, w12, b12, w3m, b3c)

    return out.reshape(B, C, H, W)


def glu_reference(x, w1, b1, w2, b2, w3, b3):
    """Pure-JAX reference (same math as the PyTorch module in eval mode)."""
    def conv1x1(t, w, b):
        wm = w.reshape(w.shape[0], w.shape[1])
        return jnp.einsum("oc,bchw->bohw", wm, t) + b[None, :, None, None]

    x1 = conv1x1(x, w1, b1)
    x2 = conv1x1(x, w2, b2)
    h = x1 * jax.nn.sigmoid(x2)
    return conv1x1(h, w3, b3).astype(x.dtype)


if __name__ == "__main__":
    key = jax.random.PRNGKey(0)
    B, C, H, W = 2, 32, 16, 16
    keys = jax.random.split(key, 7)

    x = jax.random.normal(keys[0], (B, C, H, W), dtype=jnp.float32)

    bound = 1.0 / math.sqrt(C)  # PyTorch Conv2d default init range
    w1 = jax.random.uniform(keys[1], (C, C, 1, 1), jnp.float32, -bound, bound)
    b1 = jax.random.uniform(keys[2], (C,), jnp.float32, -bound, bound)
    w2 = jax.random.uniform(keys[3], (C, C, 1, 1), jnp.float32, -bound, bound)
    b2 = jax.random.uniform(keys[4], (C,), jnp.float32, -bound, bound)
    w3 = jax.random.uniform(keys[5], (C, C, 1, 1), jnp.float32, -bound, bound)
    b3 = jax.random.uniform(keys[6], (C,), jnp.float32, -bound, bound)

    out = glu_forward(x, w1, b1, w2, b2, w3, b3)
    out = jax.block_until_ready(out)

    ref = glu_reference(x, w1, b1, w2, b2, w3, b3)
    assert out.shape == (B, C, H, W)
    assert jnp.allclose(out, ref, atol=1e-4, rtol=1e-4)

    print("KERNEL_OK")
</pallas_src>

<mosaic_0001>
module attributes {stable_mosaic.version = 11 : i64} {
  func.func @_glu_kernel(%arg0: i32, %arg1: i32, %arg2: memref<1x32x256xf32, #tpu.memory_space<vmem>>, %arg3: memref<64x32xf32, #tpu.memory_space<vmem>>, %arg4: memref<64x1xf32, #tpu.memory_space<vmem>>, %arg5: memref<32x32xf32, #tpu.memory_space<vmem>>, %arg6: memref<32x1xf32, #tpu.memory_space<vmem>>, %arg7: memref<1x32x256xf32, #tpu.memory_space<vmem>>) attributes {dimension_semantics = [#tpu.dimension_semantics<parallel>, #tpu.dimension_semantics<parallel>], iteration_bounds = array<i64: 2, 1>, scalar_prefetch = 0 : i64, scratch_operands = 0 : i64, tpu.core_type = #tpu.core_type<tc>, window_params = [{transform_indices = @transform_0, window_bounds = array<i64: 1, 32, 256>}, {pipeline_mode = #tpu.pipeline_mode<synchronous>, transform_indices = @transform_1, window_bounds = array<i64: 64, 32>}, {pipeline_mode = #tpu.pipeline_mode<synchronous>, transform_indices = @transform_2, window_bounds = array<i64: 64, 1>}, {pipeline_mode = #tpu.pipeline_mode<synchronous>, transform_indices = @transform_3, window_bounds = array<i64: 32, 32>}, {pipeline_mode = #tpu.pipeline_mode<synchronous>, transform_indices = @transform_4, window_bounds = array<i64: 32, 1>}, {transform_indices = @transform_5, window_bounds = array<i64: 1, 32, 256>}]} {
    %c0 = arith.constant 0 : index
    %c0_0 = arith.constant 0 : index
    %c0_1 = arith.constant 0 : index
    %0 = vector.load %arg2[%c0, %c0_0, %c0_1] : memref<1x32x256xf32, #tpu.memory_space<vmem>>, vector<1x32x256xf32>
    %1 = vector.shape_cast %0 : vector<1x32x256xf32> to vector<32x256xf32>
    %c0_2 = arith.constant 0 : index
    %c0_3 = arith.constant 0 : index
    %2 = vector.load %arg3[%c0_2, %c0_3] : memref<64x32xf32, #tpu.memory_space<vmem>>, vector<64x32xf32>
    %cst = arith.constant dense<0.000000e+00> : vector<64x256xf32>
    %3 = tpu.matmul %2, %1, %cst {dimension_numbers = #tpu.dot_dimension_numbers<[1], [0], [0], [1], [0, 0, 1, 1], [], []>} : vector<64x32xf32>, vector<32x256xf32>, vector<64x256xf32> -> vector<64x256xf32>
    %c0_4 = arith.constant 0 : index
    %c0_5 = arith.constant 0 : index
    %4 = vector.load %arg4[%c0_4, %c0_5] : memref<64x1xf32, #tpu.memory_space<vmem>>, vector<64x1xf32>
    %5 = vector.broadcast %4 : vector<64x1xf32> to vector<64x256xf32>
    %6 = arith.addf %3, %5 : vector<64x256xf32>
    %7 = vector.extract_strided_slice %6 {offsets = [0, 0], sizes = [32, 256], strides = [1, 1]} : vector<64x256xf32> to vector<32x256xf32>
    %8 = vector.extract_strided_slice %6 {offsets = [32, 0], sizes = [32, 256], strides = [1, 1]} : vector<64x256xf32> to vector<32x256xf32>
    %cst_6 = arith.constant 5.000000e-01 : f32
    %9 = vector.broadcast %cst_6 : f32 to vector<32x256xf32>
    %10 = arith.mulf %9, %8 : vector<32x256xf32>
    %11 = math.tanh %10 : vector<32x256xf32>
    %cst_7 = arith.constant 1.000000e+00 : f32
    %12 = vector.broadcast %cst_7 : f32 to vector<32x256xf32>
    %13 = arith.addf %11, %12 : vector<32x256xf32>
    %cst_8 = arith.constant 5.000000e-01 : f32
    %14 = vector.broadcast %cst_8 : f32 to vector<32x256xf32>
    %15 = arith.mulf %14, %13 : vector<32x256xf32>
    %16 = arith.mulf %7, %15 : vector<32x256xf32>
    %c0_9 = arith.constant 0 : index
    %c0_10 = arith.constant 0 : index
    %17 = vector.load %arg5[%c0_9, %c0_10] : memref<32x32xf32, #tpu.memory_space<vmem>>, vector<32x32xf32>
    %cst_11 = arith.constant dense<0.000000e+00> : vector<32x256xf32>
    %18 = tpu.matmul %17, %16, %cst_11 {dimension_numbers = #tpu.dot_dimension_numbers<[1], [0], [0], [1], [0, 0, 1, 1], [], []>} : vector<32x32xf32>, vector<32x256xf32>, vector<32x256xf32> -> vector<32x256xf32>
    %c0_12 = arith.constant 0 : index
    %c0_13 = arith.constant 0 : index
    %19 = vector.load %arg6[%c0_12, %c0_13] : memref<32x1xf32, #tpu.memory_space<vmem>>, vector<32x1xf32>
    %20 = vector.broadcast %19 : vector<32x1xf32> to vector<32x256xf32>
    %21 = arith.addf %18, %20 : vector<32x256xf32>
    %c0_14 = arith.constant 0 : index
    %c0_15 = arith.constant 0 : index
    %c0_16 = arith.constant 0 : index
    %22 = vector.load %arg7[%c0_14, %c0_15, %c0_16] : memref<1x32x256xf32, #tpu.memory_space<vmem>>, vector<1x32x256xf32>
    %23 = vector.shape_cast %22 : vector<1x32x256xf32> to vector<32x256xf32>
    %24 = vector.shape_cast %21 : vector<32x256xf32> to vector<1x32x256xf32>
    tpu.vector_store %arg7[%c0_14, %c0_15, %c0_16], %24 {strides = array<i32>} : memref<1x32x256xf32, #tpu.memory_space<vmem>>, vector<1x32x256xf32>,
    return
  }
  func.func @transform_0(%arg0: i32, %arg1: i32) -> (i32, i32, i32) {
    %c0_i32 = arith.constant 0 : i32
    %c0_i32_0 = arith.constant 0 : i32
    return %arg0, %c0_i32, %arg1 : i32, i32, i32
  }
  func.func @transform_1(%arg0: i32, %arg1: i32) -> (i32, i32) {
    %c0_i32 = arith.constant 0 : i32
    %c0_i32_0 = arith.constant 0 : i32
    %c0_i32_1 = arith.constant 0 : i32
    return %c0_i32, %c0_i32_0 : i32, i32
  }
  func.func @transform_2(%arg0: i32, %arg1: i32) -> (i32, i32) {
    %c0_i32 = arith.constant 0 : i32
    %c0_i32_0 = arith.constant 0 : i32
    %c0_i32_1 = arith.constant 0 : i32
    return %c0_i32, %c0_i32_0 : i32, i32
  }
  func.func @transform_3(%arg0: i32, %arg1: i32) -> (i32, i32) {
    %c0_i32 = arith.constant 0 : i32
    %c0_i32_0 = arith.constant 0 : i32
    %c0_i32_1 = arith.constant 0 : i32
    return %c0_i32, %c0_i32_0 : i32, i32
  }
  func.func @transform_4(%arg0: i32, %arg1: i32) -> (i32, i32) {
    %c0_i32 = arith.constant 0 : i32
    %c0_i32_0 = arith.constant 0 : i32
    %c0_i32_1 = arith.constant 0 : i32
    return %c0_i32, %c0_i32_0 : i32, i32
  }
  func.func @transform_5(%arg0: i32, %arg1: i32) -> (i32, i32, i32) {
    %c0_i32 = arith.constant 0 : i32
    %c0_i32_0 = arith.constant 0 : i32
    return %arg0, %c0_i32, %arg1 : i32, i32, i32
  }
}

</mosaic_0001>

<llo_original>
// kernel: tpu_custom_call.1
$region0: #{tpu_custom_call.1}
  #allocation0 [shape = 'u32[]', space=smem, size = 0x4, offset = 0x4, fixed_abs, tag = 'smem constant byte address 0x4 - core index']
  #allocation1 [shape = 'u32[144,128]{1,0:T(1,128)}', space=vmem, size = 0x12000, scoped, tag = 'internal scratch']
  %s0 = inlined_call_operand.vmem [shape: f32[2,32,256], index: 0, kind: input, shape index: {}]
  %s1 = inlined_call_operand.vmem [shape: f32[64,32], index: 1, kind: input, shape index: {}]
  %s2 = inlined_call_operand.vmem [shape: f32[64,1], index: 2, kind: input, shape index: {}]
  %s3 = inlined_call_operand.vmem [shape: f32[32,32], index: 3, kind: input, shape index: {}]
  %s4 = inlined_call_operand.vmem [shape: f32[32,1], index: 4, kind: input, shape index: {}]
  %s5 = inlined_call_operand.hbm [shape: f32[2,32,256], index: 5, kind: output, shape index: {}]
  %s6 = sld [smem:[#allocation0]]
  $region53: #{tpu_custom_call.1} parent=0
    _
  %s8 = ssub.s32 1, %s6
  %s9 = scalar_select 0, %s8, %s6
  $region1: #{tpu_custom_call.1} parent=0
    #allocation2 [shape = 'u8[65536]{0}', space=vmem, size = 0x10000, scoped, tag = 'output window, operand 0']
    #allocation3 [shape = 's32[2]{0}', space=sflag, size = 0x8, scoped, tag = 'scoped memory for tpu_custom_call.1']
    %10 = vsyncpa [#allocation3], 0
    %s11 = scalar_lea.sflag [#allocation3], 1
    %12 = vsyncpa %s11, 0
    loop: start=0, step=1, limit=4
    $region2: #{tpu_custom_call.1} parent=1 // loop_pre_header
      _
    $region3: #{tpu_custom_call.1} parent=1 // loop_header
      %s14 = sphi 0, %s18
      %p15 = scmp.ge.s32.totalorder %s14, 4
      %s21 = sphi 0, %s33
      %s22 = sphi 0, %s29
      %s23 = sphi 0, %s21
      %s24 = sphi 0, %s22
      %s25 = sphi 0, %s23
      %s26 = sphi 0, %s24
      %s38 = sphi 0, %s40
      %s41 = sphi 0, %s38
      %s42 = sphi 0, %s41
      %s58 = sphi 0, %s42
      %s62 = sphi 0, %s62
      %s64 = sphi 0, %s62
      %s65 = sphi 0, %s64
      %s79 = sphi 0, %s65
      %s83 = sphi 0, %s83
      %s85 = sphi 0, %s83
      %s86 = sphi 0, %s85
      %s100 = sphi 0, %s86
      %s104 = sphi 0, %s104
      %s106 = sphi 0, %s104
      %s107 = sphi 0, %s106
      %s121 = sphi 0, %s107
      %s125 = sphi 0, %s125
      %s127 = sphi 0, %s125
      %s128 = sphi 0, %s127
      %s142 = sphi 0, %s128
      %s150 = sphi 0, %s152
      %s153 = sphi 0, %s150
      %s154 = sphi 0, %s153
      %s170 = sphi 0, %s154
    $region4: #{tpu_custom_call.1} parent=1 // loop_header_branch
      %17 = sbr.rel (%p15) target = $region8
    $region5: #{tpu_custom_call.1} parent=1 // loop_body
      %s19 = ssub.s32 %s14, 1
      %s20 = ssub.s32 %s14, 2
      %s27 = sadd.s32 1, %s22
      %p28 = scmp.ge.s32.totalorder %s27, 1
      %s29 = scalar_select %p28, 0, %s27
      %s30 = sadd.s32 1, %s21
      %s31 = scalar_select %p28, %s30, %s21
      %p32 = scmp.ge.s32.totalorder %s31, 2
      %s33 = scalar_select %p32, 0, %s31
      %s34 = ssub.s32 %s21, %s33
      %s35 = ssub.s32 %s22, %s29
      %s36 = sor.u32 %s34, %s35
      %p37 = scmp.eq.s32.totalorder %s36, 0
      %s39 = sadd.s32 %s38, 1
      %s40 = scalar_select %p37, %s38, %s39
      %p43 = pneg %p37
      %p44 = scmp.eq.s32.totalorder %s14, 1
      %p45 = por %p43, %p44
      %p46 = scmp.ne.s32.totalorder %s38, %s41
      %p47 = scmp.eq.s32.totalorder %s14, 0
      %p48 = por %p46, %p47
      %p49 = scmp.ne.s32.totalorder %s38, %s41
      %p50 = scmp.eq.s32.totalorder %s19, 1
      %p51 = por %p49, %p50
      %p52 = scmp.ne.s32.totalorder %s41, %s42
      %p53 = scmp.eq.s32.totalorder %s19, 0
      %p54 = por %p52, %p53
      %p55 = scmp.ne.s32.totalorder %s41, %s42
      %p56 = scmp.eq.s32.totalorder %s20, 1
      %p57 = por %p55, %p56
      %p59 = scmp.ne.s32.totalorder %s42, %s58
      %p60 = scmp.eq.s32.totalorder %s20, 0
      %p61 = por %p59, %p60
      %s63 = sadd.s32 %s62, 1
      %p66 = scmp.eq.s32.totalorder %s14, 1
      %p67 = scmp.ne.s32.totalorder %s62, %s64
      %p68 = scmp.eq.s32.totalorder %s14, 0
      %p69 = por %p67, %p68
      %p70 = scmp.ne.s32.totalorder %s62, %s64
      %p71 = scmp.eq.s32.totalorder %s19, 1
      %p72 = por %p70, %p71
      %p73 = scmp.ne.s32.totalorder %s64, %s65
      %p74 = scmp.eq.s32.totalorder %s19, 0
      %p75 = por %p73, %p74
      %p76 = scmp.ne.s32.totalorder %s64, %s65
      %p77 = scmp.eq.s32.totalorder %s20, 1
      %p78 = por %p76, %p77
      %p80 = scmp.ne.s32.totalorder %s65, %s79
      %p81 = scmp.eq.s32.totalorder %s20, 0
      %p82 = por %p80, %p81
      %s84 = sadd.s32 %s83, 1
      %p87 = scmp.eq.s32.totalorder %s14, 1
      %p88 = scmp.ne.s32.totalorder %s83, %s85
      %p89 = scmp.eq.s32.totalorder %s14, 0
      %p90 = por %p88, %p89
      %p91 = scmp.ne.s32.totalorder %s83, %s85
      %p92 = scmp.eq.s32.totalorder %s19, 1
      %p93 = por %p91, %p92
      %p94 = scmp.ne.s32.totalorder %s85, %s86
      %p95 = scmp.eq.s32.totalorder %s19, 0
      %p96 = por %p94, %p95
      %p97 = scmp.ne.s32.totalorder %s85, %s86
      %p98 = scmp.eq.s32.totalorder %s20, 1
      %p99 = por %p97, %p98
      %p101 = scmp.ne.s32.totalorder %s86, %s100
      %p102 = scmp.eq.s32.totalorder %s20, 0
      %p103 = por %p101, %p102
      %s105 = sadd.s32 %s104, 1
      %p108 = scmp.eq.s32.totalorder %s14, 1
      %p109 = scmp.ne.s32.totalorder %s104, %s106
      %p110 = scmp.eq.s32.totalorder %s14, 0
      %p111 = por %p109, %p110
      %p112 = scmp.ne.s32.totalorder %s104, %s106
      %p113 = scmp.eq.s32.totalorder %s19, 1
      %p114 = por %p112, %p113
      %p115 = scmp.ne.s32.totalorder %s106, %s107
      %p116 = scmp.eq.s32.totalorder %s19, 0
      %p117 = por %p115, %p116
      %p118 = scmp.ne.s32.totalorder %s106, %s107
      %p119 = scmp.eq.s32.totalorder %s20, 1
      %p120 = por %p118, %p119
      %p122 = scmp.ne.s32.totalorder %s107, %s121
      %p123 = scmp.eq.s32.totalorder %s20, 0
      %p124 = por %p122, %p123
      %s126 = sadd.s32 %s125, 1
      %p129 = scmp.eq.s32.totalorder %s14, 1
      %p130 = scmp.ne.s32.totalorder %s125, %s127
      %p131 = scmp.eq.s32.totalorder %s14, 0
      %p132 = por %p130, %p131
      %p133 = scmp.ne.s32.totalorder %s125, %s127
      %p134 = scmp.eq.s32.totalorder %s19, 1
      %p135 = por %p133, %p134
      %p136 = scmp.ne.s32.totalorder %s127, %s128
      %p137 = scmp.eq.s32.totalorder %s19, 0
      %p138 = por %p136, %p137
      %p139 = scmp.ne.s32.totalorder %s127, %s128
      %p140 = scmp.eq.s32.totalorder %s20, 1
      %p141 = por %p139, %p140
      %p143 = scmp.ne.s32.totalorder %s128, %s142
      %p144 = scmp.eq.s32.totalorder %s20, 0
      %p145 = por %p143, %p144
      %s146 = ssub.s32 %s21, %s33
      %s147 = ssub.s32 %s22, %s29
      %s148 = sor.u32 %s146, %s147
      %p149 = scmp.eq.s32.totalorder %s148, 0
      %s151 = sadd.s32 %s150, 1
      %s152 = scalar_select %p149, %s150, %s151
      %p155 = pneg %p149
      %p156 = scmp.eq.s32.totalorder %s14, 1
      %p157 = por %p155, %p156
      %p158 = scmp.ne.s32.totalorder %s150, %s153
      %p159 = scmp.eq.s32.totalorder %s14, 0
      %p160 = por %p158, %p159
      %p161 = scmp.ne.s32.totalorder %s150, %s153
      %p162 = scmp.eq.s32.totalorder %s19, 1
      %p163 = por %p161, %p162
      %p164 = scmp.ne.s32.totalorder %s153, %s154
      %p165 = scmp.eq.s32.totalorder %s19, 0
      %p166 = por %p164, %p165
      %p167 = scmp.ne.s32.totalorder %s153, %s154
      %p168 = scmp.eq.s32.totalorder %s20, 1
      %p169 = por %p167, %p168
      %p171 = scmp.ne.s32.totalorder %s154, %s170
      %p172 = scmp.eq.s32.totalorder %s20, 0
      %p173 = por %p171, %p172
      %p174 = scmp.le.s32.totalorder 1, %s14
      %p175 = scmp.lt.s32.totalorder %s14, 3
      %p176 = pnand %p174, %p175
      %p177 = pneg %p176
      // Predicated region
      $region9: #{tpu_custom_call.1} parent=5 // pred_check
        _
      $region10: #{tpu_custom_call.1} parent=5 // pred_check_branch
        %179 = sbr.rel (%p176) target = $region12
      $region11: #{tpu_custom_call.1} parent=5 // pred_region
        %s180 = ssub.s32 %s14, 1
        // Predicated region
        $region13: #{tpu_custom_call.1} parent=11 // pred_check
          %p181 = pneg %p75
        $region14: #{tpu_custom_call.1} parent=11 // pred_check_branch
          %183 = sbr.rel (%p181) target = $region16
        $region15: #{tpu_custom_call.1} parent=11 // pred_region
          _
        $region16: #{tpu_custom_call.1} parent=11 // pred_fallthru
          _
        // Predicated region
        $region17: #{tpu_custom_call.1} parent=11 // pred_check
          %p184 = pneg %p96
        $region18: #{tpu_custom_call.1} parent=11 // pred_check_branch
          %186 = sbr.rel (%p184) target = $region20
        $region19: #{tpu_custom_call.1} parent=11 // pred_region
          _
        $region20: #{tpu_custom_call.1} parent=11 // pred_fallthru
          _
        // Predicated region
        $region21: #{tpu_custom_call.1} parent=11 // pred_check
          %p187 = pneg %p117
        $region22: #{tpu_custom_call.1} parent=11 // pred_check_branch
          %189 = sbr.rel (%p187) target = $region24
        $region23: #{tpu_custom_call.1} parent=11 // pred_region
          _
        $region24: #{tpu_custom_call.1} parent=11 // pred_fallthru
          _
        // Predicated region
        $region25: #{tpu_custom_call.1} parent=11 // pred_check
          %p190 = pneg %p138
        $region26: #{tpu_custom_call.1} parent=11 // pred_check_branch
          %192 = sbr.rel (%p190) target = $region28
        $region27: #{tpu_custom_call.1} parent=11 // pred_region
          _
        $region28: #{tpu_custom_call.1} parent=11 // pred_fallthru
          _
      $region12: #{tpu_custom_call.1} parent=5 // pred_fallthru
        _
      %p193 = scmp.lt.s32.totalorder %s14, 2
      // Predicated region
      $region29: #{tpu_custom_call.1} parent=5 // pred_check
        %p194 = pneg %p193
      $region30: #{tpu_custom_call.1} parent=5 // pred_check_branch
        %196 = sbr.rel (%p194) target = $region32
      $region31: #{tpu_custom_call.1} parent=5 // pred_region
        // Predicated region
        $region33: #{tpu_custom_call.1} parent=31 // pred_check
          %p197 = pneg %p48
        $region34: #{tpu_custom_call.1} parent=31 // pred_check_branch
          %199 = sbr.rel (%p197) target = $region36
        $region35: #{tpu_custom_call.1} parent=31 // pred_region
          %s200 = smul.u32 2, %s22
          %p201 = scmp.lt.s32.totalorder %s21, 1
          %s202 = scalar_select %p201, %s21, 1
          %p203 = scmp.lt.s32.totalorder %s200, 1
          %s204 = scalar_select %p203, %s200, 1
          %s205 = smul.addr %s202, 8
          %s206 = sadd.s32 %s204, %s205
          %s207 = smul.addr %s206, 8
          %s208 = scalar_lea.vmem %s0, %s207
          %s209 = smul.u32 2, %s22
        $region36: #{tpu_custom_call.1} parent=31 // pred_fallthru
          _
      $region32: #{tpu_custom_call.1} parent=5 // pred_fallthru
        _
      %p210 = scmp.le.s32.totalorder 1, %s14
      %p211 = scmp.lt.s32.totalorder %s14, 3
      %p212 = pnand %p210, %p211
      %p213 = pneg %p212
      // Predicated region
      $region37: #{tpu_custom_call.1} parent=5 // pred_check
        _
      $region38: #{tpu_custom_call.1} parent=5 // pred_check_branch
        %215 = sbr.rel (%p212) target = $region40
      $region39: #{tpu_custom_call.1} parent=5 // pred_region
        %s216 = ssub.s32 %s14, 1
        %s217 = smul.u32 2, %s24
        %p218 = scmp.lt.s32.totalorder %s23, 1
        %s219 = scalar_select %p218, %s23, 1
        %p220 = scmp.lt.s32.totalorder %s217, 1
        %s221 = scalar_select %p220, %s217, 1
        %s222 = smul.addr %s219, 8
        %s223 = sadd.s32 %s221, %s222
        %s224 = smul.addr %s223, 8
        %s225 = scalar_lea.vmem %s0, %s224
        %p226 = pneg %p54
        %p227 = pneg %p51
        %p228 = pneg %p75
        %p229 = pneg %p72
        %p230 = pneg %p96
        %p231 = pneg %p93
        %p232 = pneg %p117
        %p233 = pneg %p114
        %p234 = pneg %p138
        %p235 = pneg %p135
        %p236 = pneg %p166
        %p237 = pneg %p163
        %s238 = sand.u32 %s153, 1
        %s239 = scalar_lea.sflag [#allocation3], %s238
        %s240 = sand.u32 %s153, 1
        %s241 = smul.addr %s240, 64
        %s242 = scalar_lea.vmem [#allocation2], %s241
        %s243 = smul.u32 2, %s24
        %p244 = scmp.lt.s32.totalorder %s23, 1
        %s245 = scalar_select %p244, %s23, 1
        %p246 = scmp.lt.s32.totalorder %s243, 1
        %s247 = scalar_select %p246, %s243, 1
        %s248 = smul.addr %s245, 8
        %s249 = sadd.s32 %s247, %s248
        %s250 = smul.addr %s249, 8
        %s251 = scalar_lea.vmem %s0, %s250
        %s252 = smul.u32 2, %s24
        %s253 = smul.u32 2, %s24
        %v254 = vld [vmem:[%s251] sm:$0xff]
        %v255 = vld [vmem:[%s251 + $0x8] sm:$0xff]
        %v256 = vld [vmem:[%s251 + $0x10] sm:$0xff]
        %v257 = vld [vmem:[%s251 + $0x18] sm:$0xff]
        %v258 = vld [vmem:[%s251 + $0x20] sm:$0xff]
        %v259 = vld [vmem:[%s251 + $0x28] sm:$0xff]
        %v260 = vld [vmem:[%s251 + $0x30] sm:$0xff]
        %v261 = vld [vmem:[%s251 + $0x38] sm:$0xff]
        %v262 = vld [vmem:[%s1] sm:$0xff]
        %v263 = vld [vmem:[%s1 + $0x8] sm:$0xff]
        %v264 = vld [vmem:[%s1 + $0x10] sm:$0xff]
        %v265 = vld [vmem:[%s1 + $0x18] sm:$0xff]
        %v266 = vld [vmem:[%s1 + $0x20] sm:$0xff]
        %v267 = vld [vmem:[%s1 + $0x28] sm:$0xff]
        %v268 = vld [vmem:[%s1 + $0x30] sm:$0xff]
        %v269 = vld [vmem:[%s1 + $0x38] sm:$0xff]
        %v270 = vld [vmem:[%s2] sm:$0xff]
        %v271 = vld [vmem:[%s2 + $0x8] sm:$0xff]
        %v272 = vld [vmem:[%s2 + $0x10] sm:$0xff]
        %v273 = vld [vmem:[%s2 + $0x18] sm:$0xff]
        %v274 = vld [vmem:[%s2 + $0x20] sm:$0xff]
        %v275 = vld [vmem:[%s2 + $0x28] sm:$0xff]
        %v276 = vld [vmem:[%s2 + $0x30] sm:$0xff]
        %v277 = vld [vmem:[%s2 + $0x38] sm:$0xff]
        %279 = vset.pattern.permute.xlu0 0
        %280 = vperm.xlu0 %279, %v270
        %v281 = vpop.permute.xlu0 %280
        %284 = vset.pattern.permute.xlu0 0
        %285 = vperm.xlu0 %284, %v271
        %v286 = vpop.permute.xlu0 %285
        %289 = vset.pattern.permute.xlu0 0
        %290 = vperm.xlu0 %289, %v272
        %v291 = vpop.permute.xlu0 %290
        %294 = vset.pattern.permute.xlu0 0
        %295 = vperm.xlu0 %294, %v273
        %v296 = vpop.permute.xlu0 %295
        %299 = vset.pattern.permute.xlu0 0
        %300 = vperm.xlu0 %299, %v274
        %v301 = vpop.permute.xlu0 %300
        %304 = vset.pattern.permute.xlu0 0
        %305 = vperm.xlu0 %304, %v275
        %v306 = vpop.permute.xlu0 %305
        %309 = vset.pattern.permute.xlu0 0
        %310 = vperm.xlu0 %309, %v276
        %v311 = vpop.permute.xlu0 %310
        %314 = vset.pattern.permute.xlu0 0
        %315 = vperm.xlu0 %314, %v277
        %v316 = vpop.permute.xlu0 %315
        %vm318 = vcmask 261120
        %v320 = vsel %vm318, %v262, 0
        %v323 = vsel %vm318, %v263, 0
        %v326 = vsel %vm318, %v264, 0
        %v329 = vsel %vm318, %v265, 0
        %v332 = vsel %vm318, %v266, 0
        %v335 = vsel %vm318, %v267, 0
        %v338 = vsel %vm318, %v268, 0
        %v341 = vsel %vm318, %v269, 0
        %343 = vmatprep.subr.mxu0 %v255
        %344 = vmatpush1.msra.mxu0 %v254
        %345 = vmatprep.subr.mxu0 %v257
        %346 = vmatpush1.msra.mxu0 %v256
        %347 = vmatprep.subr.mxu0 %v259
        %348 = vmatpush1.msra.mxu0 %v258
        %349 = vmatprep.subr.mxu0 %v261
        %350 = vmatpush1.msra.mxu0 %v260
        %351 = vmatprep.subr.mxu0 0.0
        %352 = vmatpush1.msra.mxu0 0.0
        %353 = vmatprep.subr.mxu0 0.0
        %354 = vmatpush1.msra.mxu0 0.0
        %355 = vmatprep.subr.mxu0 0.0
        %356 = vmatpush1.msra.mxu0 0.0
        %357 = vmatprep.subr.mxu0 0.0
        %358 = vmatpush1.msra.mxu0 0.0
        %359 = vmatprep.subr.mxu0 0.0
        %360 = vmatpush1.msra.mxu0 0.0
        %361 = vmatprep.subr.mxu0 0.0
        %362 = vmatpush1.msra.mxu0 0.0
        %363 = vmatprep.subr.mxu0 0.0
        %364 = vmatpush1.msra.mxu0 0.0
        %365 = vmatprep.subr.mxu0 0.0
        %366 = vmatpush1.msra.mxu0 0.0
        %367 = vmatprep.subr.mxu0 0.0
        %368 = vmatpush1.msra.mxu0 0.0
        %369 = vmatprep.subr.mxu0 0.0
        %370 = vmatpush1.msra.mxu0 0.0
        %371 = vmatprep.subr.mxu0 0.0
        %372 = vmatpush1.msra.mxu0 0.0
        %373 = vmatprep.subr.mxu0 0.0
        %374 = vmatpush1.msra.mxu0 0.0
        %375 = vmatprep.subr.mxu0 0.0
        %376 = vmatpush1.msra.mxu0 0.0
        %377 = vmatprep.subr.mxu0 0.0
        %378 = vmatpush1.msra.mxu0 0.0
        %379 = vmatprep.subr.mxu0 0.0
        %380 = vmatpush1.msra.mxu0 0.0
        %381 = vmatprep.subr.mxu0 0.0
        %382 = vmatpush1.msra.mxu0 0.0
        %383 = vmatprep.subr.mxu0 0.0
        %384 = vmatpush1.msra.mxu0 0.0
        %385 = vmatprep.subr.mxu0 0.0
        %386 = vmatpush1.msra.mxu0 0.0
        %387 = vmatprep.subr.mxu0 0.0
        %388 = vmatpush1.msra.mxu0 0.0
        %389 = vmatprep.subr.mxu0 0.0
        %390 = vmatpush1.msra.mxu0 0.0
        %391 = vmatprep.subr.mxu0 0.0
        %392 = vmatpush1.msra.mxu0 0.0
        %393 = vmatprep.subr.mxu0 0.0
        %394 = vmatpush1.msra.mxu0 0.0
        %395 = vmatprep.subr.mxu0 0.0
        %396 = vmatpush1.msra.mxu0 0.0
        %397 = vmatprep.subr.mxu0 0.0
        %398 = vmatpush1.msra.mxu0 0.0
        %399 = vmatprep.subr.mxu0 0.0
        %400 = vmatpush1.msra.mxu0 0.0
        %401 = vmatprep.subr.mxu0 0.0
        %402 = vmatpush1.msra.mxu0 0.0
        %403 = vmatprep.subr.mxu0 0.0
        %404 = vmatpush1.msra.mxu0 0.0
        %405 = vmatprep.subr.mxu0 0.0
        %406 = vmatpush1.msra.mxu0 0.0
        %407 = vmatprep.mubr.f32.mxu0 0.0
        %408 = vmatmul.mubr.f32.gmra.mrb[0].mxu0 %v320
        %v409 = vpop.f32.mrb[0].mxu0
        %v410 = vadd.f32 %v281, %v409
        %v411 = vpop.f32.mrb[0].mxu0
        %v412 = vadd.f32 %v281, %v411
        %413 = vmatprep.mubr.f32.mxu0 0.0
        %414 = vmatmul.mubr.f32.gmra.mrb[0].mxu0 %v323
        %v415 = vpop.f32.mrb[0].mxu0
        %v416 = vadd.f32 %v286, %v415
        %v417 = vpop.f32.mrb[0].mxu0
        %v418 = vadd.f32 %v286, %v417
        %419 = vmatprep.mubr.f32.mxu0 0.0
        %420 = vmatmul.mubr.f32.gmra.mrb[0].mxu0 %v326
        %v421 = vpop.f32.mrb[0].mxu0
        %v422 = vadd.f32 %v291, %v421
        %v423 = vpop.f32.mrb[0].mxu0
        %v424 = vadd.f32 %v291, %v423
        %425 = vmatprep.mubr.f32.mxu0 0.0
        %426 = vmatmul.mubr.f32.gmra.mrb[0].mxu0 %v329
        %v427 = vpop.f32.mrb[0].mxu0
        %v428 = vadd.f32 %v296, %v427
        %v429 = vpop.f32.mrb[0].mxu0
        %v430 = vadd.f32 %v296, %v429
        %431 = vmatprep.mubr.f32.mxu0 0.0
        %432 = vmatmul.mubr.f32.gmra.mrb[0].mxu0 %v332
        %v433 = vpop.f32.mrb[0].mxu0
        %v434 = vadd.f32 %v301, %v433
        %v435 = vpop.f32.mrb[0].mxu0
        %v436 = vadd.f32 %v301, %v435
        %437 = vmatprep.mubr.f32.mxu0 0.0
        %438 = vmatmul.mubr.f32.gmra.mrb[0].mxu0 %v335
        %v439 = vpop.f32.mrb[0].mxu0
        %v440 = vadd.f32 %v306, %v439
        %v441 = vpop.f32.mrb[0].mxu0
        %v442 = vadd.f32 %v306, %v441
        %443 = vmatprep.mubr.f32.mxu0 0.0
        %444 = vmatmul.mubr.f32.gmra.mrb[0].mxu0 %v338
        %v445 = vpop.f32.mrb[0].mxu0
        %v446 = vadd.f32 %v311, %v445
        %v447 = vpop.f32.mrb[0].mxu0
        %v448 = vadd.f32 %v311, %v447
        %449 = vmatprep.mubr.f32.mxu0 0.0
        %450 = vmatmul.mubr.f32.gmra.mrb[0].mxu0 %v341
        %v451 = vpop.f32.mrb[0].mxu0
        %v452 = vadd.f32 %v316, %v451
        %v453 = vpop.f32.mrb[0].mxu0
        %v454 = vadd.f32 %v316, %v453
        %455 = vdwg.mxu0
        %v456 = vmul.f32 %v434, 0.5
        %v457 = vmul.f32 %v436, 0.5
        %v458 = vmul.f32 %v440, 0.5
        %v459 = vmul.f32 %v442, 0.5
        %v460 = vmul.f32 %v446, 0.5
        %v461 = vmul.f32 %v448, 0.5
        %v462 = vmul.f32 %v452, 0.5
        %v463 = vmul.f32 %v454, 0.5
        %v464 = vtanh.pop %v456
        %v465 = vtanh.pop %v457
        %v466 = vtanh.pop %v458
        %v467 = vtanh.pop %v459
        %v468 = vtanh.pop %v460
        %v469 = vtanh.pop %v461
        %v470 = vtanh.pop %v462
        %v471 = vtanh.pop %v463
        %v472 = vadd.f32 %v464, 1.0
        %v473 = vadd.f32 %v465, 1.0
        %v474 = vadd.f32 %v466, 1.0
        %v475 = vadd.f32 %v467, 1.0
        %v476 = vadd.f32 %v468, 1.0
        %v477 = vadd.f32 %v469, 1.0
        %v478 = vadd.f32 %v470, 1.0
        %v479 = vadd.f32 %v471, 1.0
        %v480 = vmul.f32 %v472, 0.5
        %v481 = vmul.f32 %v473, 0.5
        %v482 = vmul.f32 %v474, 0.5
        %v483 = vmul.f32 %v475, 0.5
        %v484 = vmul.f32 %v476, 0.5
        %v485 = vmul.f32 %v477, 0.5
        %v486 = vmul.f32 %v478, 0.5
        %v487 = vmul.f32 %v479, 0.5
        %v488 = vmul.f32 %v410, %v480
        %v489 = vmul.f32 %v412, %v481
        %v490 = vmul.f32 %v416, %v482
        %v491 = vmul.f32 %v418, %v483
        %v492 = vmul.f32 %v422, %v484
        %v493 = vmul.f32 %v424, %v485
        %v494 = vmul.f32 %v428, %v486
        %v495 = vmul.f32 %v430, %v487
        %v496 = vld [vmem:[%s3] sm:$0xff]
        %v497 = vld [vmem:[%s3 + $0x8] sm:$0xff]
        %v498 = vld [vmem:[%s3 + $0x10] sm:$0xff]
        %v499 = vld [vmem:[%s3 + $0x18] sm:$0xff]
        %v500 = vld [vmem:[%s4] sm:$0xff]
        %v501 = vld [vmem:[%s4 + $0x8] sm:$0xff]
        %v502 = vld [vmem:[%s4 + $0x10] sm:$0xff]
        %v503 = vld [vmem:[%s4 + $0x18] sm:$0xff]
        %505 = vset.pattern.permute.xlu0 0
        %506 = vperm.xlu0 %505, %v500
        %v507 = vpop.permute.xlu0 %506
        %510 = vset.pattern.permute.xlu0 0
        %511 = vperm.xlu0 %510, %v501
        %v512 = vpop.permute.xlu0 %511
        %515 = vset.pattern.permute.xlu0 0
        %516 = vperm.xlu0 %515, %v502
        %v517 = vpop.permute.xlu0 %516
        %520 = vset.pattern.permute.xlu0 0
        %521 = vperm.xlu0 %520, %v503
        %v522 = vpop.permute.xlu0 %521
        %v525 = vsel %vm318, %v496, 0
        %v528 = vsel %vm318, %v497, 0
        %v531 = vsel %vm318, %v498, 0
        %v534 = vsel %vm318, %v499, 0
        %536 = vmatprep.subr.mxu0 %v489
        %537 = vmatpush1.msra.mxu0 %v488
        %538 = vmatprep.subr.mxu0 %v491
        %539 = vmatpush1.msra.mxu0 %v490
        %540 = vmatprep.subr.mxu0 %v493
        %541 = vmatpush1.msra.mxu0 %v492
        %542 = vmatprep.subr.mxu0 %v495
        %543 = vmatpush1.msra.mxu0 %v494
        %544 = vmatprep.subr.mxu0 0.0
        %545 = vmatpush1.msra.mxu0 0.0
        %546 = vmatprep.subr.mxu0 0.0
        %547 = vmatpush1.msra.mxu0 0.0
        %548 = vmatprep.subr.mxu0 0.0
        %549 = vmatpush1.msra.mxu0 0.0
        %550 = vmatprep.subr.mxu0 0.0
        %551 = vmatpush1.msra.mxu0 0.0
        %552 = vmatprep.subr.mxu0 0.0
        %553 = vmatpush1.msra.mxu0 0.0
        %554 = vmatprep.subr.mxu0 0.0
        %555 = vmatpush1.msra.mxu0 0.0
        %556 = vmatprep.subr.mxu0 0.0
        %557 = vmatpush1.msra.mxu0 0.0
        %558 = vmatprep.subr.mxu0 0.0
        %559 = vmatpush1.msra.mxu0 0.0
        %560 = vmatprep.subr.mxu0 0.0
        %561 = vmatpush1.msra.mxu0 0.0
        %562 = vmatprep.subr.mxu0 0.0
        %563 = vmatpush1.msra.mxu0 0.0
        %564 = vmatprep.subr.mxu0 0.0
        %565 = vmatpush1.msra.mxu0 0.0
        %566 = vmatprep.subr.mxu0 0.0
        %567 = vmatpush1.msra.mxu0 0.0
        %568 = vmatprep.subr.mxu0 0.0
        %569 = vmatpush1.msra.mxu0 0.0
        %570 = vmatprep.subr.mxu0 0.0
        %571 = vmatpush1.msra.mxu0 0.0
        %572 = vmatprep.subr.mxu0 0.0
        %573 = vmatpush1.msra.mxu0 0.0
        %574 = vmatprep.subr.mxu0 0.0
        %575 = vmatpush1.msra.mxu0 0.0
        %576 = vmatprep.subr.mxu0 0.0
        %577 = vmatpush1.msra.mxu0 0.0
        %578 = vmatprep.subr.mxu0 0.0
        %579 = vmatpush1.msra.mxu0 0.0
        %580 = vmatprep.subr.mxu0 0.0
        %581 = vmatpush1.msra.mxu0 0.0
        %582 = vmatprep.subr.mxu0 0.0
        %583 = vmatpush1.msra.mxu0 0.0
        %584 = vmatprep.subr.mxu0 0.0
        %585 = vmatpush1.msra.mxu0 0.0
        %586 = vmatprep.subr.mxu0 0.0
        %587 = vmatpush1.msra.mxu0 0.0
        %588 = vmatprep.subr.mxu0 0.0
        %589 = vmatpush1.msra.mxu0 0.0
        %590 = vmatprep.subr.mxu0 0.0
        %591 = vmatpush1.msra.mxu0 0.0
        %592 = vmatprep.subr.mxu0 0.0
        %593 = vmatpush1.msra.mxu0 0.0
        %594 = vmatprep.subr.mxu0 0.0
        %595 = vmatpush1.msra.mxu0 0.0
        %596 = vmatprep.subr.mxu0 0.0
        %597 = vmatpush1.msra.mxu0 0.0
        %598 = vmatprep.subr.mxu0 0.0
        %599 = vmatpush1.msra.mxu0 0.0
        %600 = vmatprep.mubr.f32.mxu0 0.0
        %601 = vmatmul.mubr.f32.gmra.mrb[0].mxu0 %v525
        %v602 = vpop.f32.mrb[0].mxu0
        %v603 = vadd.f32 %v507, %v602
        %v604 = vpop.f32.mrb[0].mxu0
        %v605 = vadd.f32 %v507, %v604
        %606 = vmatprep.mubr.f32.mxu0 0.0
        %607 = vmatmul.mubr.f32.gmra.mrb[0].mxu0 %v528
        %v608 = vpop.f32.mrb[0].mxu0
        %v609 = vadd.f32 %v512, %v608
        %v610 = vpop.f32.mrb[0].mxu0
        %v611 = vadd.f32 %v512, %v610
        %612 = vmatprep.mubr.f32.mxu0 0.0
        %613 = vmatmul.mubr.f32.gmra.mrb[0].mxu0 %v531
        %v614 = vpop.f32.mrb[0].mxu0
        %v615 = vadd.f32 %v517, %v614
        %v616 = vpop.f32.mrb[0].mxu0
        %v617 = vadd.f32 %v517, %v616
        %618 = vmatprep.mubr.f32.mxu0 0.0
        %619 = vmatmul.mubr.f32.gmra.mrb[0].mxu0 %v534
        %v620 = vpop.f32.mrb[0].mxu0
        %v621 = vadd.f32 %v522, %v620
        %v622 = vpop.f32.mrb[0].mxu0
        %v623 = vadd.f32 %v522, %v622
        %624 = vdwg.mxu0
        %625 = vst [vmem:[%s242] sm:$0xff] %v603
        %626 = vst [vmem:[%s242 + $0x8] sm:$0xff] %v605
        %627 = vst [vmem:[%s242 + $0x10] sm:$0xff] %v609
        %628 = vst [vmem:[%s242 + $0x18] sm:$0xff] %v611
        %629 = vst [vmem:[%s242 + $0x20] sm:$0xff] %v615
        %630 = vst [vmem:[%s242 + $0x28] sm:$0xff] %v617
        %631 = vst [vmem:[%s242 + $0x30] sm:$0xff] %v621
        %632 = vst [vmem:[%s242 + $0x38] sm:$0xff] %v623
        %s633 = sand.u32 %s153, 1
        %s634 = scalar_lea.sflag [#allocation3], %s633
        %s635 = sand.u32 %s153, 1
        %s636 = smul.addr %s635, 64
        %s637 = scalar_lea.vmem [#allocation2], %s636
        // Predicated region
        $region41: #{tpu_custom_call.1} parent=39 // pred_check
          %p638 = pneg %p163
        $region42: #{tpu_custom_call.1} parent=39 // pred_check_branch
          %640 = sbr.rel (%p638) target = $region44
        $region43: #{tpu_custom_call.1} parent=39 // pred_region
          %s641 = smul.u32 2, %s24
          %s643 = ssub.s32 1024, 1024
          %644 = vsyncadd %s634, %s643
          %s645 = smul.addr %s23, 8
          %s646 = sadd.s32 %s641, %s645
          %s647 = smul.addr %s646, 128
          %s648 = scalar_lea.hbm %s5, %s647
          %s649 = sshll.u32 %s637, 4
          %s650 = int_to_ptr.vmem [resolvable:$true] %s649
          %655 = dma.vmem_to_hbm [thread:$0]  %s650, 1024, %s648, %s634, 256, 256, 16
        $region44: #{tpu_custom_call.1} parent=39 // pred_fallthru
          _
      $region40: #{tpu_custom_call.1} parent=5 // pred_fallthru
        _
      %p656 = scmp.le.s32.totalorder 2, %s14
      // Predicated region
      $region45: #{tpu_custom_call.1} parent=5 // pred_check
        %p657 = pneg %p656
      $region46: #{tpu_custom_call.1} parent=5 // pred_check_branch
        %659 = sbr.rel (%p657) target = $region48
      $region47: #{tpu_custom_call.1} parent=5 // pred_region
        %s660 = ssub.s32 %s14, 2
        // Predicated region
        $region49: #{tpu_custom_call.1} parent=47 // pred_check
          %p661 = pneg %p169
        $region50: #{tpu_custom_call.1} parent=47 // pred_check_branch
          %663 = sbr.rel (%p661) target = $region52
        $region51: #{tpu_custom_call.1} parent=47 // pred_region
          %s664 = sand.u32 %s154, 1
          %s665 = scalar_lea.sflag [#allocation3], %s664
          %s666 = sand.u32 %s154, 1
          %s667 = smul.addr %s666, 64
          %s668 = scalar_lea.vmem [#allocation2], %s667
          %669 = dma.done %s665, 1024
        $region52: #{tpu_custom_call.1} parent=47 // pred_fallthru
          _
      $region48: #{tpu_custom_call.1} parent=5 // pred_fallthru
        _
    $region6: #{tpu_custom_call.1} parent=1 // loop_footer
      %s18 = sadd.s32 1, %s14
    $region7: #{tpu_custom_call.1} parent=1 // loop_footer_branch
      %13 = sbr.rel target = $region3
    $region8: #{tpu_custom_call.1} parent=1 // loop_exit
      _
    %670 = vsyncpa [#allocation3], 1
    %s671 = scalar_lea.sflag [#allocation3], 1
    %672 = vsyncpa %s671, 1

</llo_original>
